<compile_context>
chip_gen: v7x
topology: tpu7x:2x2x1
jax: 0.10.0
libtpu: 0.0.40
codegen_flags: <defaults>
</compile_context>

<pallas_src>
import functools
import math

import jax
import jax.numpy as jnp
from jax.experimental import pallas as pl
from jax.experimental.pallas import tpu as pltpu


# --------------------------------------------------------------------------
# Kernels
# --------------------------------------------------------------------------
def _concat_dma_kernel(*refs, widths, offsets):
    """refs = (*in_hbm_refs, out_hbm_ref, dma_sems).

    Same-dtype concat: one HBM->HBM strided DMA per input into its column
    slab of the 2-D output; wait on all of them before returning.
    """
    n = len(widths)
    in_refs = refs[:n]
    out_ref = refs[n]
    sems = refs[n + 1]
    copies = []
    for i, (in_ref, off, w) in enumerate(zip(in_refs, offsets, widths)):
        cp = pltpu.make_async_copy(in_ref, out_ref.at[:, off:off + w], sems.at[i])
        cp.start()
        copies.append(cp)
    for cp in copies:
        cp.wait()


def _concat_cast_kernel(*refs, widths, offsets):
    """refs = (*in_vmem_refs, out_vmem_ref): fused dtype cast + lane-dense copy.

    `offsets`/`widths` are static ints and multiples of 128, so every store is
    a wide unmasked vst over the slab's lanes.
    """
    in_refs = refs[:-1]
    out_ref = refs[-1]
    for in_ref, off, w in zip(in_refs, offsets, widths):
        out_ref[:, off:off + w] = in_ref[...].astype(out_ref.dtype)


# --------------------------------------------------------------------------
# Helpers
# --------------------------------------------------------------------------
def _vmem_capacity_bytes():
    try:
        return int(pltpu.get_tpu_info().vmem_capacity_bytes)
    except Exception:
        return 64 << 20  # v7x-conservative default


def _sublane_quantum(dtypes):
    """Sublane packing quantum of the narrowest dtype: 8 f32, 16 bf16, 32 i8."""
    min_itemsize = min(jnp.dtype(d).itemsize for d in dtypes)
    return max(8, 32 // max(int(min_itemsize), 1))


def _pick_block_rows(outer, per_step_row_bytes, quantum, budget_bytes):
    """Largest sublane-aligned row block under the per-step VMEM budget, capped
    so the grid has >= 2 steps when there is enough work (v7x megacore)."""
    cap = max(quantum,
              (budget_bytes // max(per_step_row_bytes, 1)) // quantum * quantum)
    br = min(cap, max(quantum, (outer // quantum) * quantum))
    if outer >= 2 * quantum:
        half = max(quantum, ((outer // 2) // quantum) * quantum)
        br = min(br, half)
    return br


# --------------------------------------------------------------------------
# pallas_call wrappers
# --------------------------------------------------------------------------
def _concat_dma(flat_inputs, outer, total_width, widths, offsets, out_dtype):
    n = len(flat_inputs)
    kernel = functools.partial(_concat_dma_kernel, widths=widths, offsets=offsets)
    return pl.pallas_call(
        kernel,
        out_shape=jax.ShapeDtypeStruct((outer, total_width), out_dtype),
        in_specs=[pl.BlockSpec(memory_space=pl.ANY)] * n,
        out_specs=pl.BlockSpec(memory_space=pl.ANY),
        scratch_shapes=[pltpu.SemaphoreType.DMA((n,))],
    )(*flat_inputs)


def _concat_vmem_cast(flat_inputs, outer, total_width, widths, offsets,
                      out_dtype, per_step_row_bytes, quantum):
    budget = max(2 << 20, _vmem_capacity_bytes() // 8)  # ~16 MiB v5e/v6e, ~8 MiB v7x
    block_rows = _pick_block_rows(outer, per_step_row_bytes, quantum, budget)
    grid = (pl.cdiv(outer, block_rows),)

    # Double-buffered tiles + headroom, clamped well under v7x's 64 MiB VMEM.
    vmem_limit = int(min(max(2 * block_rows * per_step_row_bytes + (4 << 20),
                             8 << 20),
                         48 << 20))

    kernel = functools.partial(_concat_cast_kernel, widths=widths, offsets=offsets)
    return pl.pallas_call(
        kernel,
        out_shape=jax.ShapeDtypeStruct((outer, total_width), out_dtype),
        grid=grid,
        in_specs=[pl.BlockSpec((block_rows, w), lambda r: (r, 0)) for w in widths],
        out_specs=pl.BlockSpec((block_rows, total_width), lambda r: (r, 0)),
        compiler_params=pltpu.CompilerParams(
            dimension_semantics=("parallel",),
            vmem_limit_bytes=vmem_limit,
        ),
    )(*flat_inputs)


# --------------------------------------------------------------------------
# Public API
# --------------------------------------------------------------------------
def concatenate(*inputs, dim=1):
    """Pallas equivalent of torch.cat(inputs, dim=dim)."""
    if not inputs:
        raise ValueError("concatenate needs at least one input")
    ndim = inputs[0].ndim
    if ndim == 0:
        raise ValueError("concatenate expects tensors with at least 1 dimension")
    if dim < 0:
        dim += ndim
    if not 0 <= dim < ndim:
        raise ValueError(f"dim {dim} out of range for {ndim}-D inputs")
    for x in inputs[1:]:
        if x.ndim != ndim:
            raise ValueError("all inputs must have the same rank")
        for ax in range(ndim):
            if ax != dim and x.shape[ax] != inputs[0].shape[ax]:
                raise ValueError(
                    f"shape mismatch on axis {ax}: {x.shape} vs {inputs[0].shape}")

    out_dtype = jnp.result_type(*[x.dtype for x in inputs])
    if len(inputs) == 1:
        return inputs[0].astype(out_dtype)

    lead = inputs[0].shape[:dim]
    trail = inputs[0].shape[dim + 1:]
    outer = math.prod(lead)
    inner = math.prod(trail)

    sizes = tuple(int(x.shape[dim]) for x in inputs)
    widths = tuple(s * inner for s in sizes)
    total_width = sum(widths)
    offsets = tuple(sum(widths[:i]) for i in range(len(widths)))

    out_shape_nd = list(inputs[0].shape)
    out_shape_nd[dim] = sum(sizes)
    out_shape_nd = tuple(out_shape_nd)

    # Degenerate (zero-sized) shapes: nothing to copy, let XLA handle it.
    if outer == 0 or total_width == 0 or any(w == 0 for w in widths):
        return jnp.concatenate([x.astype(out_dtype) for x in inputs], axis=dim)

    needs_cast = any(x.dtype != out_dtype for x in inputs)
    quantum = _sublane_quantum([x.dtype for x in inputs] + [out_dtype])
    lane_aligned = all(w % 128 == 0 for w in widths)

    out_itemsize = jnp.dtype(out_dtype).itemsize
    per_step_row_bytes = (
        sum(w * jnp.dtype(x.dtype).itemsize for x, w in zip(inputs, widths))
        + total_width * out_itemsize
    )
    vmem_path_fits = 2 * quantum * per_step_row_bytes + (4 << 20) <= (48 << 20)

    # Lane-dense 2-D views: concat along `dim` == concat of these contiguous
    # column slabs (reshape is metadata-only in XLA).
    flat_inputs = [x.reshape(outer, w) for x, w in zip(inputs, widths)]

    if needs_cast and outer >= quantum and lane_aligned and vmem_path_fits:
        # Fuse the promotion cast into a blocked VMEM copy (single HBM pass).
        out2d = _concat_vmem_cast(flat_inputs, outer, total_width, widths,
                                  offsets, out_dtype, per_step_row_bytes,
                                  quantum)
    else:
        if needs_cast:
            # Unfriendly layout for the VMEM path: one XLA cast, then DMA.
            flat_inputs = [x.astype(out_dtype) for x in flat_inputs]
        # Pure copy: direct HBM->HBM strided DMAs, no VMEM/vreg round-trip.
        out2d = _concat_dma(flat_inputs, outer, total_width, widths, offsets,
                            out_dtype)

    return out2d.reshape(out_shape_nd)


class Concatenate:
    """Mirror of the PyTorch module: concatenates inputs along `dim`."""

    def __init__(self, dim=1):
        self.dim = dim

    def __call__(self, *inputs):
        return concatenate(*inputs, dim=self.dim)


# --------------------------------------------------------------------------
# Self-test
# --------------------------------------------------------------------------
if __name__ == "__main__":
    key = jax.random.PRNGKey(0)
    k1, k2, k3, k4 = jax.random.split(key, 4)

    # Typical NCHW channel concat (same dtype -> direct HBM->HBM DMA path).
    x1 = jax.random.normal(k1, (2, 4, 16, 16), dtype=jnp.float32)
    x2 = jax.random.normal(k2, (2, 6, 16, 16), dtype=jnp.float32)
    x3 = jax.random.normal(k3, (2, 2, 16, 16), dtype=jnp.float32)

    cat = Concatenate(dim=1)
    out = jax.block_until_ready(cat(x1, x2, x3))
    ref = jnp.concatenate([x1, x2, x3], axis=1)
    assert out.shape == (2, 12, 16, 16), out.shape
    assert out.dtype == ref.dtype, (out.dtype, ref.dtype)
    assert jnp.array_equal(out, ref), "Pallas DMA concat mismatch"

    # Mixed dtype with tiny outer (batch=2): cast-then-DMA path.
    x2b = x2.astype(jnp.bfloat16)
    out2 = jax.block_until_ready(concatenate(x1, x2b, dim=1))
    ref2 = jnp.concatenate([x1, x2b.astype(jnp.float32)], axis=1)
    assert out2.dtype == jnp.float32
    assert jnp.array_equal(out2, ref2), "mixed-dtype (DMA) concat mismatch"

    # Mixed dtype with sublane/lane-friendly layout: fused-cast VMEM path.
    k5, k6 = jax.random.split(k4)
    y1 = jax.random.normal(k5, (16, 4, 16, 16), dtype=jnp.float32)
    y2 = jax.random.normal(k6, (16, 6, 16, 16), dtype=jnp.bfloat16)
    out3 = jax.block_until_ready(concatenate(y1, y2, dim=1))
    ref3 = jnp.concatenate([y1, y2.astype(jnp.float32)], axis=1)
    assert out3.shape == (16, 10, 16, 16)
    assert jnp.array_equal(out3, ref3), "fused-cast VMEM concat mismatch"

    print("KERNEL_OK")
</pallas_src>

<mosaic_0001>
module attributes {stable_mosaic.version = 11 : i64} {
  func.func @_concat_dma_kernel(%arg0: memref<2x1024xf32, #tpu.memory_space<any>>, %arg1: memref<2x1536xf32, #tpu.memory_space<any>>, %arg2: memref<2x512xf32, #tpu.memory_space<any>>, %arg3: memref<2x3072xf32, #tpu.memory_space<any>>, %arg4: memref<3x!tpu.dma_semaphore, #tpu.memory_space<semaphore_mem>>) attributes {dimension_semantics = [], scalar_prefetch = 0 : i64, scratch_operands = 1 : i64, tpu.core_type = #tpu.core_type<tc>} {
    %c0_i32 = arith.constant 0 : i32
    %c0_i32_0 = arith.constant 0 : i32
    %c0_i32_1 = arith.constant 0 : i32
    %0 = tpu.memref_slice %arg3[%c0_i32_0, %c0_i32_1] : memref<2x3072xf32, #tpu.memory_space<any>> -> memref<2x1024xf32, #tpu.memory_space<any>>
    %1 = tpu.memref_slice %arg4[%c0_i32] : memref<3x!tpu.dma_semaphore, #tpu.memory_space<semaphore_mem>> -> memref<1x!tpu.dma_semaphore, #tpu.memory_space<semaphore_mem>>
    %2 = tpu.memref_squeeze %1 : memref<1x!tpu.dma_semaphore, #tpu.memory_space<semaphore_mem>> -> memref<!tpu.dma_semaphore, #tpu.memory_space<semaphore_mem>>
    tpu.enqueue_dma source(%arg0 : memref<2x1024xf32, #tpu.memory_space<any>>) target(%0 : memref<2x1024xf32, #tpu.memory_space<any>>) target_semaphore(%2 : memref<!tpu.dma_semaphore, #tpu.memory_space<semaphore_mem>>)
    %c1_i32 = arith.constant 1 : i32
    %c0_i32_2 = arith.constant 0 : i32
    %c1024_i32 = arith.constant 1024 : i32
    %3 = tpu.memref_slice %arg3[%c0_i32_2, %c1024_i32] : memref<2x3072xf32, #tpu.memory_space<any>> -> memref<2x1536xf32, #tpu.memory_space<any>>
    %4 = tpu.memref_slice %arg4[%c1_i32] : memref<3x!tpu.dma_semaphore, #tpu.memory_space<semaphore_mem>> -> memref<1x!tpu.dma_semaphore, #tpu.memory_space<semaphore_mem>>
    %5 = tpu.memref_squeeze %4 : memref<1x!tpu.dma_semaphore, #tpu.memory_space<semaphore_mem>> -> memref<!tpu.dma_semaphore, #tpu.memory_space<semaphore_mem>>
    tpu.enqueue_dma source(%arg1 : memref<2x1536xf32, #tpu.memory_space<any>>) target(%3 : memref<2x1536xf32, #tpu.memory_space<any>>) target_semaphore(%5 : memref<!tpu.dma_semaphore, #tpu.memory_space<semaphore_mem>>)
    %c2_i32 = arith.constant 2 : i32
    %c0_i32_3 = arith.constant 0 : i32
    %c2560_i32 = arith.constant 2560 : i32
    %6 = tpu.memref_slice %arg3[%c0_i32_3, %c2560_i32] : memref<2x3072xf32, #tpu.memory_space<any>> -> memref<2x512xf32, #tpu.memory_space<any>>
    %7 = tpu.memref_slice %arg4[%c2_i32] : memref<3x!tpu.dma_semaphore, #tpu.memory_space<semaphore_mem>> -> memref<1x!tpu.dma_semaphore, #tpu.memory_space<semaphore_mem>>
    %8 = tpu.memref_squeeze %7 : memref<1x!tpu.dma_semaphore, #tpu.memory_space<semaphore_mem>> -> memref<!tpu.dma_semaphore, #tpu.memory_space<semaphore_mem>>
    tpu.enqueue_dma source(%arg2 : memref<2x512xf32, #tpu.memory_space<any>>) target(%6 : memref<2x512xf32, #tpu.memory_space<any>>) target_semaphore(%8 : memref<!tpu.dma_semaphore, #tpu.memory_space<semaphore_mem>>)
    %c0_i32_4 = arith.constant 0 : i32
    %c0_i32_5 = arith.constant 0 : i32
    %c0_i32_6 = arith.constant 0 : i32
    %9 = tpu.memref_slice %arg3[%c0_i32_5, %c0_i32_6] : memref<2x3072xf32, #tpu.memory_space<any>> -> memref<2x1024xf32, #tpu.memory_space<any>>
    %10 = tpu.memref_slice %arg4[%c0_i32_4] : memref<3x!tpu.dma_semaphore, #tpu.memory_space<semaphore_mem>> -> memref<1x!tpu.dma_semaphore, #tpu.memory_space<semaphore_mem>>
    %11 = tpu.memref_squeeze %10 : memref<1x!tpu.dma_semaphore, #tpu.memory_space<semaphore_mem>> -> memref<!tpu.dma_semaphore, #tpu.memory_space<semaphore_mem>>
    tpu.wait_dma2 semaphore(%11 : memref<!tpu.dma_semaphore, #tpu.memory_space<semaphore_mem>>) src(%arg0 : memref<2x1024xf32, #tpu.memory_space<any>>) dst(%9 : memref<2x1024xf32, #tpu.memory_space<any>>)
    %c1_i32_7 = arith.constant 1 : i32
    %c0_i32_8 = arith.constant 0 : i32
    %c1024_i32_9 = arith.constant 1024 : i32
    %12 = tpu.memref_slice %arg3[%c0_i32_8, %c1024_i32_9] : memref<2x3072xf32, #tpu.memory_space<any>> -> memref<2x1536xf32, #tpu.memory_space<any>>
    %13 = tpu.memref_slice %arg4[%c1_i32_7] : memref<3x!tpu.dma_semaphore, #tpu.memory_space<semaphore_mem>> -> memref<1x!tpu.dma_semaphore, #tpu.memory_space<semaphore_mem>>
    %14 = tpu.memref_squeeze %13 : memref<1x!tpu.dma_semaphore, #tpu.memory_space<semaphore_mem>> -> memref<!tpu.dma_semaphore, #tpu.memory_space<semaphore_mem>>
    tpu.wait_dma2 semaphore(%14 : memref<!tpu.dma_semaphore, #tpu.memory_space<semaphore_mem>>) src(%arg1 : memref<2x1536xf32, #tpu.memory_space<any>>) dst(%12 : memref<2x1536xf32, #tpu.memory_space<any>>)
    %c2_i32_10 = arith.constant 2 : i32
    %c0_i32_11 = arith.constant 0 : i32
    %c2560_i32_12 = arith.constant 2560 : i32
    %15 = tpu.memref_slice %arg3[%c0_i32_11, %c2560_i32_12] : memref<2x3072xf32, #tpu.memory_space<any>> -> memref<2x512xf32, #tpu.memory_space<any>>
    %16 = tpu.memref_slice %arg4[%c2_i32_10] : memref<3x!tpu.dma_semaphore, #tpu.memory_space<semaphore_mem>> -> memref<1x!tpu.dma_semaphore, #tpu.memory_space<semaphore_mem>>
    %17 = tpu.memref_squeeze %16 : memref<1x!tpu.dma_semaphore, #tpu.memory_space<semaphore_mem>> -> memref<!tpu.dma_semaphore, #tpu.memory_space<semaphore_mem>>
    tpu.wait_dma2 semaphore(%17 : memref<!tpu.dma_semaphore, #tpu.memory_space<semaphore_mem>>) src(%arg2 : memref<2x512xf32, #tpu.memory_space<any>>) dst(%15 : memref<2x512xf32, #tpu.memory_space<any>>)
    return
  }
}

</mosaic_0001>

<llo_original>
// kernel: tpu_custom_call.1
$region0: #{tpu_custom_call.1}
  #allocation0 [shape = 'u32[]', space=smem, size = 0x4, offset = 0x4, fixed_abs, tag = 'smem constant byte address 0x4 - core index']
  #allocation1 [shape = 'u32[144,128]{1,0:T(1,128)}', space=vmem, size = 0x12000, scoped, tag = 'internal scratch']
  #allocation2 [shape = 's32[3]{0}', space=sflag, size = 0xc, scoped, tag = 'scratch operand']
  #allocation3 [shape = 's32[]', space=sflag, size = 0x4, offset = 0, fixed_abs, tag = 'sflag constant byte address 0x0 - dummy sync flag']
  #allocation4 [shape = 'u32[0]{0}', space=smem, size = 0, offset = 0, fixed_abs, tag = 'smem constant byte address 0x0 - null']
  #allocation5 [shape = 's32[]', space=sflag, size = 0x4, offset = 0, fixed_abs, tag = 'sflag constant byte address 0x0 - dummy sync flag']
  #allocation6 [shape = 'u32[0]{0}', space=smem, size = 0, offset = 0, fixed_abs, tag = 'smem constant byte address 0x0 - null']
  #allocation7 [shape = 's32[]', space=sflag, size = 0x4, offset = 0, fixed_abs, tag = 'sflag constant byte address 0x0 - dummy sync flag']
  #allocation8 [shape = 'u32[0]{0}', space=smem, size = 0, offset = 0, fixed_abs, tag = 'smem constant byte address 0x0 - null']
  %s0 = inlined_call_operand.hbm [shape: f32[2,1024], index: 0, kind: input, shape index: {}]
  %s1 = inlined_call_operand.hbm [shape: f32[2,1536], index: 1, kind: input, shape index: {}]
  %s2 = inlined_call_operand.hbm [shape: f32[2,512], index: 2, kind: input, shape index: {}]
  %s3 = inlined_call_operand.hbm [shape: f32[2,3072], index: 3, kind: output, shape index: {}]
  %s4 = sld [smem:[#allocation0]]
  $region2: #{tpu_custom_call.1} parent=0
    _
  %s6 = ssub.s32 1, %s4
  %s7 = scalar_select 0, %s6, %s4
  %s9 = sshll.u32 1, 14
  %s10 = sxor.u32 4294967295, %s9
  %s13 = sshll.u32 3, 24
  %s14 = sxor.u32 4294967295, %s13
  %s15 = sand.u32 0, %s14
  %s17 = sor.u32 %s15, 0
  %20 = dma.general %s0, 256, %s3, [#allocation2], [#allocation3], [#allocation4], %s17, 0
  %s21 = scalar_lea.hbm %s3, 256
  %s22 = scalar_lea.sflag [#allocation2], 1
  %s24 = sshll.u32 1, 14
  %s25 = sxor.u32 4294967295, %s24
  %s28 = sshll.u32 3, 24
  %s29 = sxor.u32 4294967295, %s28
  %s30 = sand.u32 0, %s29
  %s32 = sor.u32 %s30, 0
  %35 = dma.general %s1, 384, %s21, %s22, [#allocation5], [#allocation6], %s32, 0
  %s36 = scalar_lea.hbm %s3, 640
  %s37 = scalar_lea.sflag [#allocation2], 2
  %s39 = sshll.u32 1, 14
  %s40 = sxor.u32 4294967295, %s39
  %s43 = sshll.u32 3, 24
  %s44 = sxor.u32 4294967295, %s43
  %s45 = sand.u32 0, %s44
  %s47 = sor.u32 %s45, 0
  %50 = dma.general %s2, 128, %s36, %s37, [#allocation7], [#allocation8], %s47, 0
  %s51 = smul.u32 2, 1
  %s52 = smul.u32 %s51, 8
  %s53 = sshll.u32 %s52, 4
  %54 = dma.done [#allocation2], %s53
  %s55 = smul.u32 %s51, 12
  %s56 = sshll.u32 %s55, 4
  %57 = dma.done %s22, %s56
  %s58 = smul.u32 %s51, 4
  %s59 = sshll.u32 %s58, 4
  %60 = dma.done %s37, %s59
  %61 = vsyncmov [#allocation2]
  %s62 = vpop.sfrf %61
  %p63 = scmp.eq.s32.totalorder %s62, 0
  %p64 = pneg %p63
  %66 = shalt.err (%p64)
  %s67 = scalar_lea.sflag [#allocation2], 1
  %68 = vsyncmov %s67
  %s69 = vpop.sfrf %68
  %p70 = scmp.eq.s32.totalorder %s69, 0
  %p71 = pneg %p70
  %73 = shalt.err (%p71)
  %s74 = scalar_lea.sflag [#allocation2], 2
  %75 = vsyncmov %s74
  %s76 = vpop.sfrf %75
  %p77 = scmp.eq.s32.totalorder %s76, 0
  %p78 = pneg %p77
  %80 = shalt.err (%p78)

</llo_original>
